<compile_context>
chip_gen: v6e
topology: v6e:2x2x1
jax: 0.10.0
libtpu: 0.0.40
codegen_flags: <defaults>
</compile_context>

<pallas_src>
import jax
import jax.numpy as jnp
from jax import lax
from jax.experimental import pallas as pl
from jax.experimental.pallas import tpu as pltpu


def _sigmoid(v):
    # Exact sigmoid, shared by the kernel and the pure-JAX reference so the
    # 1e-5 parity check stays tight.
    # TODO(synk): at real model sizes, pl.reciprocal(1 + exp(-v), approx=True)
    # moves the divide onto the EUP slot (and bf16 matmuls halve weight DMA),
    # at the cost of a looser tolerance.
    return 1.0 / (1.0 + jnp.exp(-v))


def _vae_kernel(x_ref, zrep_ref,
                ew1_ref, eb1_ref,
                ew2m_ref, eb2m_ref, ew2s_ref, eb2s_ref,
                dw1_ref, db1_ref, dw2_ref, db2_ref,
                xrec_ref, mean_ref, sd_ref):
    B = x_ref.shape[0]
    BL = zrep_ref.shape[0]
    L = BL // B

    # ---- Encoder MLP (runs exactly once): linear -> sigmoid -> linear ------
    x = x_ref[...]                                                   # [B, Din]
    h = _sigmoid(jnp.dot(x, ew1_ref[...],
                         preferred_element_type=jnp.float32) + eb1_ref[...])
    mean = jnp.dot(h, ew2m_ref[...],
                   preferred_element_type=jnp.float32) + eb2m_ref[...]   # [B, Z]
    sd = jnp.dot(h, ew2s_ref[...],
                 preferred_element_type=jnp.float32) + eb2s_ref[...]     # [B, Z]
    mean_ref[...] = mean
    sd_ref[...] = sd

    # ---- Reparameterization for all L samples at once (batch-major) --------
    # Row r = i*L + l must see (mean[i], sd[i], z_noise[l]).  mean/sd are
    # expanded to [B*L, Z] with an exact 0/1 selection matmul (MXU) instead of
    # a gather or a [B, L, Z] -> [B*L, Z] reshape.
    r = lax.broadcasted_iota(jnp.int32, (BL, B), 0)
    c = lax.broadcasted_iota(jnp.int32, (BL, B), 1)
    bsel = jnp.where((r >= c * L) & (r < (c + 1) * L), 1.0, 0.0)     # [BL, B]
    mean_rep = jnp.dot(bsel, mean, preferred_element_type=jnp.float32)
    sd_rep = jnp.dot(bsel, sd, preferred_element_type=jnp.float32)
    temp_z = zrep_ref[...] * sd_rep + mean_rep                       # [BL, Z]

    # ---- Decoder MLP over all B*L rows: lin -> sigmoid -> lin -> sigmoid ---
    d1 = _sigmoid(jnp.dot(temp_z, dw1_ref[...],
                          preferred_element_type=jnp.float32) + db1_ref[...])
    out = _sigmoid(jnp.dot(d1, dw2_ref[...],
                           preferred_element_type=jnp.float32) + db2_ref[...])
    xrec_ref[...] = out.astype(xrec_ref.dtype)                       # [BL, Xd]


def vae_m2_forward(x, z_noise, params):
    """Pallas implementation of VAE_m2.forward.

    x:        [B, Din] float32
    z_noise:  [L, Z] float32 standard-normal samples (one row per MVG.sample())
    params:   dict of enc/dec weights (w: [in, out] = PyTorch weight transposed,
              b: [1, out])
    returns:  (x_rec [B*L, x_dim], mean [B, Z], sd [B, Z])
    """
    B, Din = x.shape
    L, Z = z_noise.shape
    ew1, eb1 = params["enc_w1"], params["enc_b1"]
    ew2, eb2 = params["enc_w2"], params["enc_b2"]
    dw1, db1 = params["dec_w1"], params["dec_b1"]
    dw2, db2 = params["dec_w2"], params["dec_b2"]
    He = ew1.shape[1]
    Hd = dw1.shape[1]
    Xd = dw2.shape[1]
    assert ew2.shape[1] == 2 * Z and dw1.shape[0] == Z

    # Split the second encoder layer into its mean / sd halves once, wrapper
    # side, so the kernel never lane-slices enc_out at offset Z.
    ew2m, ew2s = ew2[:, :Z], ew2[:, Z:]
    eb2m, eb2s = eb2[:, :Z], eb2[:, Z:]

    # Noise replicated batch-major: row i*L + l holds z_noise[l].
    z_rep = jnp.tile(z_noise, (B, 1))                                # [B*L, Z]

    def full(shape):
        return pl.BlockSpec(shape, lambda i: (0,) * len(shape))

    x_rec, mean, sd = pl.pallas_call(
        _vae_kernel,
        out_shape=(
            jax.ShapeDtypeStruct((B * L, Xd), jnp.float32),
            jax.ShapeDtypeStruct((B, Z), jnp.float32),
            jax.ShapeDtypeStruct((B, Z), jnp.float32),
        ),
        grid=(1,),
        in_specs=[
            full((B, Din)),        # x
            full((B * L, Z)),      # z_rep (batch-major noise)
            full((Din, He)),       # enc_w1
            full((1, He)),         # enc_b1
            full((He, Z)),         # enc_w2, mean half
            full((1, Z)),          # enc_b2, mean half
            full((He, Z)),         # enc_w2, sd half
            full((1, Z)),          # enc_b2, sd half
            full((Z, Hd)),         # dec_w1
            full((1, Hd)),         # dec_b1
            full((Hd, Xd)),        # dec_w2
            full((1, Xd)),         # dec_b2
        ],
        out_specs=(
            full((B * L, Xd)),     # x_rec, already batch-major: no wrapper transpose
            full((B, Z)),          # mean
            full((B, Z)),          # sd
        ),
        compiler_params=pltpu.CompilerParams(
            dimension_semantics=("arbitrary",)),
    )(x, z_rep, ew1, eb1, ew2m, eb2m, ew2s, eb2s, dw1, db1, dw2, db2)

    return x_rec, mean, sd


def _ref_forward(x, z_noise, params):
    """Pure-JAX reference mirroring the PyTorch module."""
    ew1, eb1 = params["enc_w1"], params["enc_b1"]
    ew2, eb2 = params["enc_w2"], params["enc_b2"]
    dw1, db1 = params["dec_w1"], params["dec_b1"]
    dw2, db2 = params["dec_w2"], params["dec_b2"]
    Z = z_noise.shape[1]
    h = _sigmoid(x @ ew1 + eb1)
    enc_out = h @ ew2 + eb2
    mean, sd = enc_out[:, :Z], enc_out[:, Z:]
    temp_z = (z_noise[None, :, :] * sd[:, None, :] + mean[:, None, :]).reshape(-1, Z)
    d1 = _sigmoid(temp_z @ dw1 + db1)
    out = _sigmoid(d1 @ dw2 + db2)
    return out, mean, sd


if __name__ == "__main__":
    # Small shapes consistent with the module:
    #   enc_layers = [(32, 64), (64, 16)]  -> z_dim = 8 (16 = 2 * 8)
    #   dec_layers = [(8, 64), (64, 32)]   -> x_dim = 32
    B, Din, He, Z, Hd, Xd, L = 8, 32, 64, 8, 64, 32, 2

    key = jax.random.PRNGKey(0)
    ks = jax.random.split(key, 10)
    scale = 0.1
    params = {
        "enc_w1": scale * jax.random.normal(ks[0], (Din, He), jnp.float32),
        "enc_b1": scale * jax.random.normal(ks[1], (1, He), jnp.float32),
        "enc_w2": scale * jax.random.normal(ks[2], (He, 2 * Z), jnp.float32),
        "enc_b2": scale * jax.random.normal(ks[3], (1, 2 * Z), jnp.float32),
        "dec_w1": scale * jax.random.normal(ks[4], (Z, Hd), jnp.float32),
        "dec_b1": scale * jax.random.normal(ks[5], (1, Hd), jnp.float32),
        "dec_w2": scale * jax.random.normal(ks[6], (Hd, Xd), jnp.float32),
        "dec_b2": scale * jax.random.normal(ks[7], (1, Xd), jnp.float32),
    }

    x = jax.random.normal(ks[8], (B, Din), jnp.float32)
    # MVG.sample() draws from N(0, I); drawn deterministically here and fed in.
    z_noise = jax.random.normal(ks[9], (L, Z), jnp.float32)

    x_rec, mean, sd = jax.block_until_ready(vae_m2_forward(x, z_noise, params))

    # Correctness check against the pure-JAX reference of the PyTorch forward.
    r_rec, r_mean, r_sd = _ref_forward(x, z_noise, params)
    assert x_rec.shape == (B * L, Xd) and mean.shape == (B, Z) and sd.shape == (B, Z)
    assert jnp.allclose(x_rec, r_rec, atol=1e-5, rtol=1e-5)
    assert jnp.allclose(mean, r_mean, atol=1e-5, rtol=1e-5)
    assert jnp.allclose(sd, r_sd, atol=1e-5, rtol=1e-5)

    print("KERNEL_OK")
</pallas_src>

<mosaic_0001>
module attributes {stable_mosaic.version = 11 : i64} {
  func.func @_vae_kernel(%arg0: i32, %arg1: memref<8x32xf32, #tpu.memory_space<vmem>>, %arg2: memref<16x8xf32, #tpu.memory_space<vmem>>, %arg3: memref<32x64xf32, #tpu.memory_space<vmem>>, %arg4: memref<1x64xf32, #tpu.memory_space<vmem>>, %arg5: memref<64x8xf32, #tpu.memory_space<vmem>>, %arg6: memref<1x8xf32, #tpu.memory_space<vmem>>, %arg7: memref<64x8xf32, #tpu.memory_space<vmem>>, %arg8: memref<1x8xf32, #tpu.memory_space<vmem>>, %arg9: memref<8x64xf32, #tpu.memory_space<vmem>>, %arg10: memref<1x64xf32, #tpu.memory_space<vmem>>, %arg11: memref<64x32xf32, #tpu.memory_space<vmem>>, %arg12: memref<1x32xf32, #tpu.memory_space<vmem>>, %arg13: memref<16x32xf32, #tpu.memory_space<vmem>>, %arg14: memref<8x8xf32, #tpu.memory_space<vmem>>, %arg15: memref<8x8xf32, #tpu.memory_space<vmem>>) attributes {dimension_semantics = [#tpu.dimension_semantics<arbitrary>], iteration_bounds = array<i64: 1>, scalar_prefetch = 0 : i64, scratch_operands = 0 : i64, tpu.core_type = #tpu.core_type<tc>, window_params = [{pipeline_mode = #tpu.pipeline_mode<synchronous>, transform_indices = @transform_0, window_bounds = array<i64: 8, 32>}, {pipeline_mode = #tpu.pipeline_mode<synchronous>, transform_indices = @transform_1, window_bounds = array<i64: 16, 8>}, {pipeline_mode = #tpu.pipeline_mode<synchronous>, transform_indices = @transform_2, window_bounds = array<i64: 32, 64>}, {pipeline_mode = #tpu.pipeline_mode<synchronous>, transform_indices = @transform_3, window_bounds = array<i64: 1, 64>}, {pipeline_mode = #tpu.pipeline_mode<synchronous>, transform_indices = @transform_4, window_bounds = array<i64: 64, 8>}, {pipeline_mode = #tpu.pipeline_mode<synchronous>, transform_indices = @transform_5, window_bounds = array<i64: 1, 8>}, {pipeline_mode = #tpu.pipeline_mode<synchronous>, transform_indices = @transform_6, window_bounds = array<i64: 64, 8>}, {pipeline_mode = #tpu.pipeline_mode<synchronous>, transform_indices = @transform_7, window_bounds = array<i64: 1, 8>}, {pipeline_mode = #tpu.pipeline_mode<synchronous>, transform_indices = @transform_8, window_bounds = array<i64: 8, 64>}, {pipeline_mode = #tpu.pipeline_mode<synchronous>, transform_indices = @transform_9, window_bounds = array<i64: 1, 64>}, {pipeline_mode = #tpu.pipeline_mode<synchronous>, transform_indices = @transform_10, window_bounds = array<i64: 64, 32>}, {pipeline_mode = #tpu.pipeline_mode<synchronous>, transform_indices = @transform_11, window_bounds = array<i64: 1, 32>}, {pipeline_mode = #tpu.pipeline_mode<synchronous>, transform_indices = @transform_12, window_bounds = array<i64: 16, 32>}, {pipeline_mode = #tpu.pipeline_mode<synchronous>, transform_indices = @transform_13, window_bounds = array<i64: 8, 8>}, {pipeline_mode = #tpu.pipeline_mode<synchronous>, transform_indices = @transform_14, window_bounds = array<i64: 8, 8>}]} {
    %c0 = arith.constant 0 : index
    %c0_0 = arith.constant 0 : index
    %0 = vector.load %arg1[%c0, %c0_0] : memref<8x32xf32, #tpu.memory_space<vmem>>, vector<8x32xf32>
    %c0_1 = arith.constant 0 : index
    %c0_2 = arith.constant 0 : index
    %1 = vector.load %arg3[%c0_1, %c0_2] : memref<32x64xf32, #tpu.memory_space<vmem>>, vector<32x64xf32>
    %cst = arith.constant dense<0.000000e+00> : vector<8x64xf32>
    %2 = tpu.matmul %0, %1, %cst {dimension_numbers = #tpu.dot_dimension_numbers<[1], [0], [0], [1], [0, 0, 1, 1], [], []>} : vector<8x32xf32>, vector<32x64xf32>, vector<8x64xf32> -> vector<8x64xf32>
    %c0_3 = arith.constant 0 : index
    %c0_4 = arith.constant 0 : index
    %3 = vector.load %arg4[%c0_3, %c0_4] : memref<1x64xf32, #tpu.memory_space<vmem>>, vector<1x64xf32>
    %4 = vector.broadcast %3 : vector<1x64xf32> to vector<8x64xf32>
    %5 = arith.addf %2, %4 : vector<8x64xf32>
    %cst_5 = arith.constant 0.000000e+00 : f32
    %6 = vector.broadcast %cst_5 : f32 to vector<8x64xf32>
    %7 = arith.subf %6, %5 : vector<8x64xf32>
    %8 = math.exp %7 : vector<8x64xf32>
    %cst_6 = arith.constant 1.000000e+00 : f32
    %9 = vector.broadcast %cst_6 : f32 to vector<8x64xf32>
    %10 = arith.addf %9, %8 : vector<8x64xf32>
    %cst_7 = arith.constant 1.000000e+00 : f32
    %11 = vector.broadcast %cst_7 : f32 to vector<8x64xf32>
    %12 = arith.divf %11, %10 : vector<8x64xf32>
    %c0_8 = arith.constant 0 : index
    %c0_9 = arith.constant 0 : index
    %13 = vector.load %arg5[%c0_8, %c0_9] : memref<64x8xf32, #tpu.memory_space<vmem>>, vector<64x8xf32>
    %cst_10 = arith.constant dense<0.000000e+00> : vector<8x8xf32>
    %14 = tpu.matmul %12, %13, %cst_10 {dimension_numbers = #tpu.dot_dimension_numbers<[1], [0], [0], [1], [0, 0, 1, 1], [], []>} : vector<8x64xf32>, vector<64x8xf32>, vector<8x8xf32> -> vector<8x8xf32>
    %c0_11 = arith.constant 0 : index
    %c0_12 = arith.constant 0 : index
    %15 = vector.load %arg6[%c0_11, %c0_12] : memref<1x8xf32, #tpu.memory_space<vmem>>, vector<1x8xf32>
    %16 = vector.broadcast %15 : vector<1x8xf32> to vector<8x8xf32>
    %17 = arith.addf %14, %16 : vector<8x8xf32>
    %c0_13 = arith.constant 0 : index
    %c0_14 = arith.constant 0 : index
    %18 = vector.load %arg7[%c0_13, %c0_14] : memref<64x8xf32, #tpu.memory_space<vmem>>, vector<64x8xf32>
    %cst_15 = arith.constant dense<0.000000e+00> : vector<8x8xf32>
    %19 = tpu.matmul %12, %18, %cst_15 {dimension_numbers = #tpu.dot_dimension_numbers<[1], [0], [0], [1], [0, 0, 1, 1], [], []>} : vector<8x64xf32>, vector<64x8xf32>, vector<8x8xf32> -> vector<8x8xf32>
    %c0_16 = arith.constant 0 : index
    %c0_17 = arith.constant 0 : index
    %20 = vector.load %arg8[%c0_16, %c0_17] : memref<1x8xf32, #tpu.memory_space<vmem>>, vector<1x8xf32>
    %21 = vector.broadcast %20 : vector<1x8xf32> to vector<8x8xf32>
    %22 = arith.addf %19, %21 : vector<8x8xf32>
    %c0_18 = arith.constant 0 : index
    %c0_19 = arith.constant 0 : index
    %23 = vector.load %arg14[%c0_18, %c0_19] : memref<8x8xf32, #tpu.memory_space<vmem>>, vector<8x8xf32>
    tpu.vector_store %arg14[%c0_18, %c0_19], %17 {strides = array<i32>} : memref<8x8xf32, #tpu.memory_space<vmem>>, vector<8x8xf32>,
    %c0_20 = arith.constant 0 : index
    %c0_21 = arith.constant 0 : index
    %24 = vector.load %arg15[%c0_20, %c0_21] : memref<8x8xf32, #tpu.memory_space<vmem>>, vector<8x8xf32>
    tpu.vector_store %arg15[%c0_20, %c0_21], %22 {strides = array<i32>} : memref<8x8xf32, #tpu.memory_space<vmem>>, vector<8x8xf32>,
    %25 = tpu.iota {dimensions = array<i32: 0>} : vector<16x8xi32>
    %26 = tpu.iota {dimensions = array<i32: 1>} : vector<16x8xi32>
    %c2_i32 = arith.constant 2 : i32
    %27 = vector.broadcast %c2_i32 : i32 to vector<16x8xi32>
    %28 = arith.muli %26, %27 : vector<16x8xi32>
    %29 = arith.cmpi sge, %25, %28 : vector<16x8xi32>
    %c1_i32 = arith.constant 1 : i32
    %30 = vector.broadcast %c1_i32 : i32 to vector<16x8xi32>
    %31 = arith.addi %26, %30 : vector<16x8xi32>
    %c2_i32_22 = arith.constant 2 : i32
    %32 = vector.broadcast %c2_i32_22 : i32 to vector<16x8xi32>
    %33 = arith.muli %31, %32 : vector<16x8xi32>
    %34 = arith.cmpi slt, %25, %33 : vector<16x8xi32>
    %35 = arith.andi %29, %34 : vector<16x8xi1>
    %cst_23 = arith.constant 1.000000e+00 : f32
    %cst_24 = arith.constant 0.000000e+00 : f32
    %36 = vector.broadcast %cst_23 : f32 to vector<16x8xf32>
    %37 = vector.broadcast %cst_24 : f32 to vector<16x8xf32>
    %38 = arith.select %35, %36, %37 : vector<16x8xi1>, vector<16x8xf32>
    %cst_25 = arith.constant dense<0.000000e+00> : vector<16x8xf32>
    %39 = tpu.matmul %38, %17, %cst_25 {dimension_numbers = #tpu.dot_dimension_numbers<[1], [0], [0], [1], [0, 0, 1, 1], [], []>} : vector<16x8xf32>, vector<8x8xf32>, vector<16x8xf32> -> vector<16x8xf32>
    %cst_26 = arith.constant dense<0.000000e+00> : vector<16x8xf32>
    %40 = tpu.matmul %38, %22, %cst_26 {dimension_numbers = #tpu.dot_dimension_numbers<[1], [0], [0], [1], [0, 0, 1, 1], [], []>} : vector<16x8xf32>, vector<8x8xf32>, vector<16x8xf32> -> vector<16x8xf32>
    %c0_27 = arith.constant 0 : index
    %c0_28 = arith.constant 0 : index
    %41 = vector.load %arg2[%c0_27, %c0_28] : memref<16x8xf32, #tpu.memory_space<vmem>>, vector<16x8xf32>
    %42 = arith.mulf %41, %40 : vector<16x8xf32>
    %43 = arith.addf %42, %39 : vector<16x8xf32>
    %c0_29 = arith.constant 0 : index
    %c0_30 = arith.constant 0 : index
    %44 = vector.load %arg9[%c0_29, %c0_30] : memref<8x64xf32, #tpu.memory_space<vmem>>, vector<8x64xf32>
    %cst_31 = arith.constant dense<0.000000e+00> : vector<16x64xf32>
    %45 = tpu.matmul %43, %44, %cst_31 {dimension_numbers = #tpu.dot_dimension_numbers<[1], [0], [0], [1], [0, 0, 1, 1], [], []>} : vector<16x8xf32>, vector<8x64xf32>, vector<16x64xf32> -> vector<16x64xf32>
    %c0_32 = arith.constant 0 : index
    %c0_33 = arith.constant 0 : index
    %46 = vector.load %arg10[%c0_32, %c0_33] : memref<1x64xf32, #tpu.memory_space<vmem>>, vector<1x64xf32>
    %47 = vector.broadcast %46 : vector<1x64xf32> to vector<16x64xf32>
    %48 = arith.addf %45, %47 : vector<16x64xf32>
    %cst_34 = arith.constant 0.000000e+00 : f32
    %49 = vector.broadcast %cst_34 : f32 to vector<16x64xf32>
    %50 = arith.subf %49, %48 : vector<16x64xf32>
    %51 = math.exp %50 : vector<16x64xf32>
    %cst_35 = arith.constant 1.000000e+00 : f32
    %52 = vector.broadcast %cst_35 : f32 to vector<16x64xf32>
    %53 = arith.addf %52, %51 : vector<16x64xf32>
    %cst_36 = arith.constant 1.000000e+00 : f32
    %54 = vector.broadcast %cst_36 : f32 to vector<16x64xf32>
    %55 = arith.divf %54, %53 : vector<16x64xf32>
    %c0_37 = arith.constant 0 : index
    %c0_38 = arith.constant 0 : index
    %56 = vector.load %arg11[%c0_37, %c0_38] : memref<64x32xf32, #tpu.memory_space<vmem>>, vector<64x32xf32>
    %cst_39 = arith.constant dense<0.000000e+00> : vector<16x32xf32>
    %57 = tpu.matmul %55, %56, %cst_39 {dimension_numbers = #tpu.dot_dimension_numbers<[1], [0], [0], [1], [0, 0, 1, 1], [], []>} : vector<16x64xf32>, vector<64x32xf32>, vector<16x32xf32> -> vector<16x32xf32>
    %c0_40 = arith.constant 0 : index
    %c0_41 = arith.constant 0 : index
    %58 = vector.load %arg12[%c0_40, %c0_41] : memref<1x32xf32, #tpu.memory_space<vmem>>, vector<1x32xf32>
    %59 = vector.broadcast %58 : vector<1x32xf32> to vector<16x32xf32>
    %60 = arith.addf %57, %59 : vector<16x32xf32>
    %cst_42 = arith.constant 0.000000e+00 : f32
    %61 = vector.broadcast %cst_42 : f32 to vector<16x32xf32>
    %62 = arith.subf %61, %60 : vector<16x32xf32>
    %63 = math.exp %62 : vector<16x32xf32>
    %cst_43 = arith.constant 1.000000e+00 : f32
    %64 = vector.broadcast %cst_43 : f32 to vector<16x32xf32>
    %65 = arith.addf %64, %63 : vector<16x32xf32>
    %cst_44 = arith.constant 1.000000e+00 : f32
    %66 = vector.broadcast %cst_44 : f32 to vector<16x32xf32>
    %67 = arith.divf %66, %65 : vector<16x32xf32>
    %c0_45 = arith.constant 0 : index
    %c0_46 = arith.constant 0 : index
    %68 = vector.load %arg13[%c0_45, %c0_46] : memref<16x32xf32, #tpu.memory_space<vmem>>, vector<16x32xf32>
    tpu.vector_store %arg13[%c0_45, %c0_46], %67 {strides = array<i32>} : memref<16x32xf32, #tpu.memory_space<vmem>>, vector<16x32xf32>,
    return
  }
  func.func @transform_0(%arg0: i32) -> (i32, i32) {
    %c0_i32 = arith.constant 0 : i32
    %c0_i32_0 = arith.constant 0 : i32
    %c0_i32_1 = arith.constant 0 : i32
    return %c0_i32, %c0_i32_0 : i32, i32
  }
  func.func @transform_1(%arg0: i32) -> (i32, i32) {
    %c0_i32 = arith.constant 0 : i32
    %c0_i32_0 = arith.constant 0 : i32
    %c0_i32_1 = arith.constant 0 : i32
    return %c0_i32, %c0_i32_0 : i32, i32
  }
  func.func @transform_2(%arg0: i32) -> (i32, i32) {
    %c0_i32 = arith.constant 0 : i32
    %c0_i32_0 = arith.constant 0 : i32
    %c0_i32_1 = arith.constant 0 : i32
    return %c0_i32, %c0_i32_0 : i32, i32
  }
  func.func @transform_3(%arg0: i32) -> (i32, i32) {
    %c0_i32 = arith.constant 0 : i32
    %c0_i32_0 = arith.constant 0 : i32
    %c0_i32_1 = arith.constant 0 : i32
    return %c0_i32, %c0_i32_0 : i32, i32
  }
  func.func @transform_4(%arg0: i32) -> (i32, i32) {
    %c0_i32 = arith.constant 0 : i32
    %c0_i32_0 = arith.constant 0 : i32
    %c0_i32_1 = arith.constant 0 : i32
    return %c0_i32, %c0_i32_0 : i32, i32
  }
  func.func @transform_5(%arg0: i32) -> (i32, i32) {
    %c0_i32 = arith.constant 0 : i32
    %c0_i32_0 = arith.constant 0 : i32
    %c0_i32_1 = arith.constant 0 : i32
    return %c0_i32, %c0_i32_0 : i32, i32
  }
  func.func @transform_6(%arg0: i32) -> (i32, i32) {
    %c0_i32 = arith.constant 0 : i32
    %c0_i32_0 = arith.constant 0 : i32
    %c0_i32_1 = arith.constant 0 : i32
    return %c0_i32, %c0_i32_0 : i32, i32
  }
  func.func @transform_7(%arg0: i32) -> (i32, i32) {
    %c0_i32 = arith.constant 0 : i32
    %c0_i32_0 = arith.constant 0 : i32
    %c0_i32_1 = arith.constant 0 : i32
    return %c0_i32, %c0_i32_0 : i32, i32
  }
  func.func @transform_8(%arg0: i32) -> (i32, i32) {
    %c0_i32 = arith.constant 0 : i32
    %c0_i32_0 = arith.constant 0 : i32
    %c0_i32_1 = arith.constant 0 : i32
    return %c0_i32, %c0_i32_0 : i32, i32
  }
  func.func @transform_9(%arg0: i32) -> (i32, i32) {
    %c0_i32 = arith.constant 0 : i32
    %c0_i32_0 = arith.constant 0 : i32
    %c0_i32_1 = arith.constant 0 : i32
    return %c0_i32, %c0_i32_0 : i32, i32
  }
  func.func @transform_10(%arg0: i32) -> (i32, i32) {
    %c0_i32 = arith.constant 0 : i32
    %c0_i32_0 = arith.constant 0 : i32
    %c0_i32_1 = arith.constant 0 : i32
    return %c0_i32, %c0_i32_0 : i32, i32
  }
  func.func @transform_11(%arg0: i32) -> (i32, i32) {
    %c0_i32 = arith.constant 0 : i32
    %c0_i32_0 = arith.constant 0 : i32
    %c0_i32_1 = arith.constant 0 : i32
    return %c0_i32, %c0_i32_0 : i32, i32
  }
  func.func @transform_12(%arg0: i32) -> (i32, i32) {
    %c0_i32 = arith.constant 0 : i32
    %c0_i32_0 = arith.constant 0 : i32
    %c0_i32_1 = arith.constant 0 : i32
    return %c0_i32, %c0_i32_0 : i32, i32
  }
  func.func @transform_13(%arg0: i32) -> (i32, i32) {
    %c0_i32 = arith.constant 0 : i32
    %c0_i32_0 = arith.constant 0 : i32
    %c0_i32_1 = arith.constant 0 : i32
    return %c0_i32, %c0_i32_0 : i32, i32
  }
  func.func @transform_14(%arg0: i32) -> (i32, i32) {
    %c0_i32 = arith.constant 0 : i32
    %c0_i32_0 = arith.constant 0 : i32
    %c0_i32_1 = arith.constant 0 : i32
    return %c0_i32, %c0_i32_0 : i32, i32
  }
}

</mosaic_0001>

<llo_original>
// kernel: tpu_custom_call.1
$region0: #{tpu_custom_call.1}
  #allocation0 [shape = 'u32[]', space=smem, size = 0x4, offset = 0x4, fixed_abs, tag = 'smem constant byte address 0x4 - core index']
  #allocation1 [shape = 'u32[144,128]{1,0:T(1,128)}', space=vmem, size = 0x12000, scoped, tag = 'internal scratch']
  %s0 = inlined_call_operand.vmem [shape: f32[8,32], index: 0, kind: input, shape index: {}]
  %s1 = inlined_call_operand.vmem [shape: f32[16,8], index: 1, kind: input, shape index: {}]
  %s2 = inlined_call_operand.vmem [shape: f32[32,64], index: 2, kind: input, shape index: {}]
  %s3 = inlined_call_operand.vmem [shape: f32[1,64], index: 3, kind: input, shape index: {}]
  %s4 = inlined_call_operand.vmem [shape: f32[64,8], index: 4, kind: input, shape index: {}]
  %s5 = inlined_call_operand.vmem [shape: f32[1,8], index: 5, kind: input, shape index: {}]
  %s6 = inlined_call_operand.vmem [shape: f32[64,8], index: 6, kind: input, shape index: {}]
  %s7 = inlined_call_operand.vmem [shape: f32[1,8], index: 7, kind: input, shape index: {}]
  %s8 = inlined_call_operand.vmem [shape: f32[8,64], index: 8, kind: input, shape index: {}]
  %s9 = inlined_call_operand.vmem [shape: f32[1,64], index: 9, kind: input, shape index: {}]
  %s10 = inlined_call_operand.vmem [shape: f32[64,32], index: 10, kind: input, shape index: {}]
  %s11 = inlined_call_operand.vmem [shape: f32[1,32], index: 11, kind: input, shape index: {}]
  %s12 = inlined_call_operand.hbm [shape: f32[16,32], index: 12, kind: output, shape index: {0}]
  %s13 = inlined_call_operand.hbm [shape: f32[8,8], index: 13, kind: output, shape index: {1}]
  %s14 = inlined_call_operand.hbm [shape: f32[8,8], index: 14, kind: output, shape index: {2}]
  %15 = xla_tuple %s12, %s13, %s14
  %s16 = sld [smem:[#allocation0]]
  $region74: #{tpu_custom_call.1} parent=0
    _
  %s18 = ssub.s32 1, %s16
  %s19 = scalar_select 0, %s18, %s16
  $region1: #{tpu_custom_call.1} parent=0
    #allocation2 [shape = 'u8[8192]{0}', space=vmem, size = 0x2000, scoped, tag = 'output window, operand 0, single buffered']
    #allocation3 [shape = 's32[1]{0}', space=sflag, size = 0x4, scoped, tag = 'scoped memory for tpu_custom_call.1']
    #allocation4 [shape = 'u8[4096]{0}', space=vmem, size = 0x1000, scoped, tag = 'output window, operand 1, single buffered']
    #allocation5 [shape = 's32[1]{0}', space=sflag, size = 0x4, scoped, tag = 'scoped memory for tpu_custom_call.1']
    #allocation6 [shape = 'u8[4096]{0}', space=vmem, size = 0x1000, scoped, tag = 'output window, operand 2, single buffered']
    %20 = vsyncpa [#allocation3], 0
    %21 = vsyncpa [#allocation5], 0
    // Predicated region
    $region2: #{tpu_custom_call.1} parent=1 // pred_check
      _
    $region3: #{tpu_custom_call.1} parent=1 // pred_check_branch
      %23 = sbr.rel (0) target = $region5
    $region4: #{tpu_custom_call.1} parent=1 // pred_region
      _
    $region5: #{tpu_custom_call.1} parent=1 // pred_fallthru
      _
    // Predicated region
    $region6: #{tpu_custom_call.1} parent=1 // pred_check
      _
    $region7: #{tpu_custom_call.1} parent=1 // pred_check_branch
      %25 = sbr.rel (0) target = $region9
    $region8: #{tpu_custom_call.1} parent=1 // pred_region
      _
    $region9: #{tpu_custom_call.1} parent=1 // pred_fallthru
      _
    // Predicated region
    $region10: #{tpu_custom_call.1} parent=1 // pred_check
      _
    $region11: #{tpu_custom_call.1} parent=1 // pred_check_branch
      %27 = sbr.rel (0) target = $region13
    $region12: #{tpu_custom_call.1} parent=1 // pred_region
      _
    $region13: #{tpu_custom_call.1} parent=1 // pred_fallthru
      _
    // Predicated region
    $region14: #{tpu_custom_call.1} parent=1 // pred_check
      _
    $region15: #{tpu_custom_call.1} parent=1 // pred_check_branch
      %29 = sbr.rel (0) target = $region17
    $region16: #{tpu_custom_call.1} parent=1 // pred_region
      _
    $region17: #{tpu_custom_call.1} parent=1 // pred_fallthru
      _
    // Predicated region
    $region18: #{tpu_custom_call.1} parent=1 // pred_check
      _
    $region19: #{tpu_custom_call.1} parent=1 // pred_check_branch
      %31 = sbr.rel (0) target = $region21
    $region20: #{tpu_custom_call.1} parent=1 // pred_region
      _
    $region21: #{tpu_custom_call.1} parent=1 // pred_fallthru
      _
    // Predicated region
    $region22: #{tpu_custom_call.1} parent=1 // pred_check
      _
    $region23: #{tpu_custom_call.1} parent=1 // pred_check_branch
      %33 = sbr.rel (0) target = $region25
    $region24: #{tpu_custom_call.1} parent=1 // pred_region
      _
    $region25: #{tpu_custom_call.1} parent=1 // pred_fallthru
      _
    // Predicated region
    $region26: #{tpu_custom_call.1} parent=1 // pred_check
      _
    $region27: #{tpu_custom_call.1} parent=1 // pred_check_branch
      %35 = sbr.rel (0) target = $region29
    $region28: #{tpu_custom_call.1} parent=1 // pred_region
      _
    $region29: #{tpu_custom_call.1} parent=1 // pred_fallthru
      _
    // Predicated region
    $region30: #{tpu_custom_call.1} parent=1 // pred_check
      _
    $region31: #{tpu_custom_call.1} parent=1 // pred_check_branch
      %37 = sbr.rel (0) target = $region33
    $region32: #{tpu_custom_call.1} parent=1 // pred_region
      _
    $region33: #{tpu_custom_call.1} parent=1 // pred_fallthru
      _
    // Predicated region
    $region34: #{tpu_custom_call.1} parent=1 // pred_check
      _
    $region35: #{tpu_custom_call.1} parent=1 // pred_check_branch
      %39 = sbr.rel (0) target = $region37
    $region36: #{tpu_custom_call.1} parent=1 // pred_region
      _
    $region37: #{tpu_custom_call.1} parent=1 // pred_fallthru
      _
    // Predicated region
    $region38: #{tpu_custom_call.1} parent=1 // pred_check
      _
    $region39: #{tpu_custom_call.1} parent=1 // pred_check_branch
      %41 = sbr.rel (0) target = $region41
    $region40: #{tpu_custom_call.1} parent=1 // pred_region
      _
    $region41: #{tpu_custom_call.1} parent=1 // pred_fallthru
      _
    // Predicated region
    $region42: #{tpu_custom_call.1} parent=1 // pred_check
      _
    $region43: #{tpu_custom_call.1} parent=1 // pred_check_branch
      %43 = sbr.rel (0) target = $region45
    $region44: #{tpu_custom_call.1} parent=1 // pred_region
      _
    $region45: #{tpu_custom_call.1} parent=1 // pred_fallthru
      _
    // Predicated region
    $region46: #{tpu_custom_call.1} parent=1 // pred_check
      _
    $region47: #{tpu_custom_call.1} parent=1 // pred_check_branch
      %45 = sbr.rel (0) target = $region49
    $region48: #{tpu_custom_call.1} parent=1 // pred_region
      _
    $region49: #{tpu_custom_call.1} parent=1 // pred_fallthru
      _
    %v46 = vld [vmem:[%s0] sm:$0xff]
    %v47 = vld [vmem:[%s2] sm:$0xff]
    %v48 = vld [vmem:[%s2 + $0x8] sm:$0xff]
    %v49 = vld [vmem:[%s2 + $0x10] sm:$0xff]
    %v50 = vld [vmem:[%s2 + $0x18] sm:$0xff]
    %v51 = vld [vmem:[%s3] sm:$0x1]
    %v53 = vlaneseq
    %v54 = vshrl.u32 %v53, 7
    %v55 = vsub.s32 0, %v54
    %v56 = vrot.slane %v51, %v55
    %vm58 = vcmask 261120
    %v60 = vsel %vm58, %v46, 0
    %62 = vmatprep.subr.mxu0 0.0
    %63 = vmatpush1.msra.mxu0 0.0
    %64 = vmatprep.subr.mxu0 0.0
    %65 = vmatpush1.msra.mxu0 0.0
    %66 = vmatprep.subr.mxu0 0.0
    %67 = vmatpush1.msra.mxu0 0.0
    %68 = vmatprep.subr.mxu0 0.0
    %69 = vmatpush1.msra.mxu0 0.0
    %70 = vmatprep.subr.mxu0 0.0
    %71 = vmatpush1.msra.mxu0 0.0
    %72 = vmatprep.subr.mxu0 0.0
    %73 = vmatpush1.msra.mxu0 0.0
    %74 = vmatprep.subr.mxu0 0.0
    %75 = vmatpush1.msra.mxu0 0.0
    %76 = vmatprep.subr.mxu0 0.0
    %77 = vmatpush1.msra.mxu0 0.0
    %78 = vmatprep.subr.mxu0 0.0
    %79 = vmatpush1.msra.mxu0 0.0
    %80 = vmatprep.subr.mxu0 0.0
    %81 = vmatpush1.msra.mxu0 0.0
    %82 = vmatprep.subr.mxu0 0.0
    %83 = vmatpush1.msra.mxu0 0.0
    %84 = vmatprep.subr.mxu0 0.0
    %85 = vmatpush1.msra.mxu0 0.0
    %86 = vmatprep.subr.mxu0 0.0
    %87 = vmatpush1.msra.mxu0 %v50
    %88 = vmatprep.subr.mxu0 0.0
    %89 = vmatpush1.msra.mxu0 %v49
    %90 = vmatprep.subr.mxu0 0.0
    %91 = vmatpush1.msra.mxu0 %v48
    %92 = vmatprep.subr.mxu0 0.0
    %93 = vmatpush1.msra.mxu0 %v47
    %94 = vmatprep.subr.mxu0 0.0
    %95 = vmatpush2.msra.mxu0 0.0
    %96 = vmatprep.subr.mxu0 0.0
    %97 = vmatpush2.msra.mxu0 0.0
    %98 = vmatprep.subr.mxu0 0.0
    %99 = vmatpush2.msra.mxu0 0.0
    %100 = vmatprep.subr.mxu0 0.0
    %101 = vmatpush2.msra.mxu0 0.0
    %102 = vmatprep.subr.mxu0 0.0
    %103 = vmatpush2.msra.mxu0 0.0
    %104 = vmatprep.subr.mxu0 0.0
    %105 = vmatpush2.msra.mxu0 0.0
    %106 = vmatprep.subr.mxu0 0.0
    %107 = vmatpush2.msra.mxu0 0.0
    %108 = vmatprep.subr.mxu0 0.0
    %109 = vmatpush2.msra.mxu0 0.0
    %110 = vmatprep.subr.mxu0 0.0
    %111 = vmatpush2.msra.mxu0 0.0
    %112 = vmatprep.subr.mxu0 0.0
    %113 = vmatpush2.msra.mxu0 0.0
    %114 = vmatprep.subr.mxu0 0.0
    %115 = vmatpush2.msra.mxu0 0.0
    %116 = vmatprep.subr.mxu0 0.0
    %117 = vmatpush2.msra.mxu0 0.0
    %118 = vmatprep.subr.mxu0 0.0
    %119 = vmatpush2.msra.mxu0 0.0
    %120 = vmatprep.subr.mxu0 0.0
    %121 = vmatpush2.msra.mxu0 0.0
    %122 = vmatprep.subr.mxu0 0.0
    %123 = vmatpush2.msra.mxu0 0.0
    %124 = vmatprep.subr.mxu0 0.0
    %125 = vmatpush2.msra.mxu0 0.0
    %126 = vmatprep.mubr.f32.mxu0 0.0
    %127 = vmatmul.mubr.f32.gmra.mxu0 %v60
    %v128 = vpop.f32.mrf.mxu0
    %v129 = vadd.f32 %v56, %v128
    %v130 = vpop.f32.mrf.mxu0
    %131 = vdwg.mxu0
    %v132 = vsub.f32 0.0, %v129
    %v133 = vmul.f32 %v132, 1.442695
    %v134 = vpow.pop %v133
    %v135 = vadd.f32 %v134, 1.0
    %v136 = vrcp.pop %v135
    %v137 = vmul.f32 1.0, %v136
    %v138 = vld [vmem:[%s4] sm:$0xff]
    %v139 = vld [vmem:[%s4 + $0x8] sm:$0xff]
    %v140 = vld [vmem:[%s4 + $0x10] sm:$0xff]
    %v141 = vld [vmem:[%s4 + $0x18] sm:$0xff]
    %v142 = vld [vmem:[%s4 + $0x20] sm:$0xff]
    %v143 = vld [vmem:[%s4 + $0x28] sm:$0xff]
    %v144 = vld [vmem:[%s4 + $0x30] sm:$0xff]
    %v145 = vld [vmem:[%s4 + $0x38] sm:$0xff]
    %v146 = vld [vmem:[%s5] sm:$0x1]
    %v148 = vlaneseq
    %v149 = vshrl.u32 %v148, 7
    %v150 = vsub.s32 0, %v149
    %v151 = vrot.slane %v146, %v150
    %vm153 = vcmask 523264
    %v155 = vsel %vm153, %v137, 0
    %157 = vmatprep.subr.mxu0 0.0
    %158 = vmatpush1.msra.mxu0 0.0
    %159 = vmatprep.subr.mxu0 0.0
    %160 = vmatpush1.msra.mxu0 0.0
    %161 = vmatprep.subr.mxu0 0.0
    %162 = vmatpush1.msra.mxu0 0.0
    %163 = vmatprep.subr.mxu0 0.0
    %164 = vmatpush1.msra.mxu0 0.0
    %165 = vmatprep.subr.mxu0 0.0
    %166 = vmatpush1.msra.mxu0 0.0
    %167 = vmatprep.subr.mxu0 0.0
    %168 = vmatpush1.msra.mxu0 0.0
    %169 = vmatprep.subr.mxu0 0.0
    %170 = vmatpush1.msra.mxu0 0.0
    %171 = vmatprep.subr.mxu0 0.0
    %172 = vmatpush1.msra.mxu0 0.0
    %173 = vmatprep.subr.mxu0 0.0
    %174 = vmatpush1.msra.mxu0 %v145
    %175 = vmatprep.subr.mxu0 0.0
    %176 = vmatpush1.msra.mxu0 %v144
    %177 = vmatprep.subr.mxu0 0.0
    %178 = vmatpush1.msra.mxu0 %v143
    %179 = vmatprep.subr.mxu0 0.0
    %180 = vmatpush1.msra.mxu0 %v142
    %181 = vmatprep.subr.mxu0 0.0
    %182 = vmatpush1.msra.mxu0 %v141
    %183 = vmatprep.subr.mxu0 0.0
    %184 = vmatpush1.msra.mxu0 %v140
    %185 = vmatprep.subr.mxu0 0.0
    %186 = vmatpush1.msra.mxu0 %v139
    %187 = vmatprep.subr.mxu0 0.0
    %188 = vmatpush1.msra.mxu0 %v138
    %189 = vmatprep.subr.mxu0 0.0
    %190 = vmatpush2.msra.mxu0 0.0
    %191 = vmatprep.subr.mxu0 0.0
    %192 = vmatpush2.msra.mxu0 0.0
    %193 = vmatprep.subr.mxu0 0.0
    %194 = vmatpush2.msra.mxu0 0.0
    %195 = vmatprep.subr.mxu0 0.0
    %196 = vmatpush2.msra.mxu0 0.0
    %197 = vmatprep.subr.mxu0 0.0
    %198 = vmatpush2.msra.mxu0 0.0
    %199 = vmatprep.subr.mxu0 0.0
    %200 = vmatpush2.msra.mxu0 0.0
    %201 = vmatprep.subr.mxu0 0.0
    %202 = vmatpush2.msra.mxu0 0.0
    %203 = vmatprep.subr.mxu0 0.0
    %204 = vmatpush2.msra.mxu0 0.0
    %205 = vmatprep.subr.mxu0 0.0
    %206 = vmatpush2.msra.mxu0 0.0
    %207 = vmatprep.subr.mxu0 0.0
    %208 = vmatpush2.msra.mxu0 0.0
    %209 = vmatprep.subr.mxu0 0.0
    %210 = vmatpush2.msra.mxu0 0.0
    %211 = vmatprep.subr.mxu0 0.0
    %212 = vmatpush2.msra.mxu0 0.0
    %213 = vmatprep.subr.mxu0 0.0
    %214 = vmatpush2.msra.mxu0 0.0
    %215 = vmatprep.subr.mxu0 0.0
    %216 = vmatpush2.msra.mxu0 0.0
    %217 = vmatprep.subr.mxu0 0.0
    %218 = vmatpush2.msra.mxu0 0.0
    %219 = vmatprep.subr.mxu0 0.0
    %220 = vmatpush2.msra.mxu0 0.0
    %221 = vmatprep.mubr.f32.mxu0 0.0
    %222 = vmatmul.mubr.f32.gmra.mxu0 %v155
    %v223 = vpop.f32.mrf.mxu0
    %v224 = vadd.f32 %v151, %v223
    %v225 = vpop.f32.mrf.mxu0
    %226 = vdwg.mxu0
    %v227 = vld [vmem:[%s6] sm:$0xff]
    %v228 = vld [vmem:[%s6 + $0x8] sm:$0xff]
    %v229 = vld [vmem:[%s6 + $0x10] sm:$0xff]
    %v230 = vld [vmem:[%s6 + $0x18] sm:$0xff]
    %v231 = vld [vmem:[%s6 + $0x20] sm:$0xff]
    %v232 = vld [vmem:[%s6 + $0x28] sm:$0xff]
    %v233 = vld [vmem:[%s6 + $0x30] sm:$0xff]
    %v234 = vld [vmem:[%s6 + $0x38] sm:$0xff]
    %v235 = vld [vmem:[%s7] sm:$0x1]
    %v237 = vlaneseq
    %v238 = vshrl.u32 %v237, 7
    %v239 = vsub.s32 0, %v238
    %v240 = vrot.slane %v235, %v239
    %242 = vmatprep.subr.mxu0 0.0
    %243 = vmatpush1.msra.mxu0 0.0
    %244 = vmatprep.subr.mxu0 0.0
    %245 = vmatpush1.msra.mxu0 0.0
    %246 = vmatprep.subr.mxu0 0.0
    %247 = vmatpush1.msra.mxu0 0.0
    %248 = vmatprep.subr.mxu0 0.0
    %249 = vmatpush1.msra.mxu0 0.0
    %250 = vmatprep.subr.mxu0 0.0
    %251 = vmatpush1.msra.mxu0 0.0
    %252 = vmatprep.subr.mxu0 0.0
    %253 = vmatpush1.msra.mxu0 0.0
    %254 = vmatprep.subr.mxu0 0.0
    %255 = vmatpush1.msra.mxu0 0.0
    %256 = vmatprep.subr.mxu0 0.0
    %257 = vmatpush1.msra.mxu0 0.0
    %258 = vmatprep.subr.mxu0 0.0
    %259 = vmatpush1.msra.mxu0 %v234
    %260 = vmatprep.subr.mxu0 0.0
    %261 = vmatpush1.msra.mxu0 %v233
    %262 = vmatprep.subr.mxu0 0.0
    %263 = vmatpush1.msra.mxu0 %v232
    %264 = vmatprep.subr.mxu0 0.0
    %265 = vmatpush1.msra.mxu0 %v231
    %266 = vmatprep.subr.mxu0 0.0
    %267 = vmatpush1.msra.mxu0 %v230
    %268 = vmatprep.subr.mxu0 0.0
    %269 = vmatpush1.msra.mxu0 %v229
    %270 = vmatprep.subr.mxu0 0.0
    %271 = vmatpush1.msra.mxu0 %v228
    %272 = vmatprep.subr.mxu0 0.0
    %273 = vmatpush1.msra.mxu0 %v227
    %274 = vmatprep.subr.mxu0 0.0
    %275 = vmatpush2.msra.mxu0 0.0
    %276 = vmatprep.subr.mxu0 0.0
    %277 = vmatpush2.msra.mxu0 0.0
    %278 = vmatprep.subr.mxu0 0.0
    %279 = vmatpush2.msra.mxu0 0.0
    %280 = vmatprep.subr.mxu0 0.0
    %281 = vmatpush2.msra.mxu0 0.0
    %282 = vmatprep.subr.mxu0 0.0
    %283 = vmatpush2.msra.mxu0 0.0
    %284 = vmatprep.subr.mxu0 0.0
    %285 = vmatpush2.msra.mxu0 0.0
    %286 = vmatprep.subr.mxu0 0.0
    %287 = vmatpush2.msra.mxu0 0.0
    %288 = vmatprep.subr.mxu0 0.0
    %289 = vmatpush2.msra.mxu0 0.0
    %290 = vmatprep.subr.mxu0 0.0
    %291 = vmatpush2.msra.mxu0 0.0
    %292 = vmatprep.subr.mxu0 0.0
    %293 = vmatpush2.msra.mxu0 0.0
    %294 = vmatprep.subr.mxu0 0.0
    %295 = vmatpush2.msra.mxu0 0.0
    %296 = vmatprep.subr.mxu0 0.0
    %297 = vmatpush2.msra.mxu0 0.0
    %298 = vmatprep.subr.mxu0 0.0
    %299 = vmatpush2.msra.mxu0 0.0
    %300 = vmatprep.subr.mxu0 0.0
    %301 = vmatpush2.msra.mxu0 0.0
    %302 = vmatprep.subr.mxu0 0.0
    %303 = vmatpush2.msra.mxu0 0.0
    %304 = vmatprep.subr.mxu0 0.0
    %305 = vmatpush2.msra.mxu0 0.0
    %306 = vmatprep.mubr.f32.mxu0 0.0
    %307 = vmatmul.mubr.f32.gmra.mxu0 %v155
    %v308 = vpop.f32.mrf.mxu0
    %v309 = vadd.f32 %v240, %v308
    %v310 = vpop.f32.mrf.mxu0
    %311 = vdwg.mxu0
    %vm312 = vcmask 64512
    %313 = vst.msk [vmem:[#allocation4] sm:$0xff] %vm312, %v224
    %314 = vst.msk [vmem:[#allocation6] sm:$0xff] %vm312, %v309
    %v315 = vlaneseq
    %v316 = vshrl.u32 %v315, 7
    %v317 = vadd.s32 %v316, 8
    %v318 = vlaneseq
    %v319 = vand.u32 %v318, 127
    %v320 = vmul.u32 %v319, 2
    %vm321 = vcmp.ge.s32.totalorder %v316, %v320
    %vm322 = vcmp.ge.s32.totalorder %v317, %v320
    %v323 = vadd.s32 %v319, 1
    %v324 = vmul.u32 %v323, 2
    %vm325 = vcmp.lt.s32.totalorder %v316, %v324
    %vm326 = vcmp.lt.s32.totalorder %v317, %v324
    %vm327 = vmand %vm321, %vm325
    %vm328 = vmand %vm322, %vm326
    %v329 = vsel %vm327, 1.0, 0.0
    %v330 = vsel %vm328, 1.0, 0.0
    %v332 = vsel %vm312, %v329, 0
    %v335 = vsel %vm312, %v330, 0
    %337 = vmatprep.subr.mxu0 0.0
    %338 = vmatpush1.msra.mxu0 0.0
    %339 = vmatprep.subr.mxu0 0.0
    %340 = vmatpush1.msra.mxu0 0.0
    %341 = vmatprep.subr.mxu0 0.0
    %342 = vmatpush1.msra.mxu0 0.0
    %343 = vmatprep.subr.mxu0 0.0
    %344 = vmatpush1.msra.mxu0 0.0
    %345 = vmatprep.subr.mxu0 0.0
    %346 = vmatpush1.msra.mxu0 0.0
    %347 = vmatprep.subr.mxu0 0.0
    %348 = vmatpush1.msra.mxu0 0.0
    %349 = vmatprep.subr.mxu0 0.0
    %350 = vmatpush1.msra.mxu0 0.0
    %351 = vmatprep.subr.mxu0 0.0
    %352 = vmatpush1.msra.mxu0 0.0
    %353 = vmatprep.subr.mxu0 0.0
    %354 = vmatpush1.msra.mxu0 0.0
    %355 = vmatprep.subr.mxu0 0.0
    %356 = vmatpush1.msra.mxu0 0.0
    %357 = vmatprep.subr.mxu0 0.0
    %358 = vmatpush1.msra.mxu0 0.0
    %359 = vmatprep.subr.mxu0 0.0
    %360 = vmatpush1.msra.mxu0 0.0
    %361 = vmatprep.subr.mxu0 0.0
    %362 = vmatpush1.msra.mxu0 0.0
    %363 = vmatprep.subr.mxu0 0.0
    %364 = vmatpush1.msra.mxu0 0.0
    %365 = vmatprep.subr.mxu0 0.0
    %366 = vmatpush1.msra.mxu0 0.0
    %367 = vmatprep.subr.mxu0 0.0
    %368 = vmatpush1.msra.mxu0 %v224
    %369 = vmatprep.subr.mxu0 0.0
    %370 = vmatpush2.msra.mxu0 0.0
    %371 = vmatprep.subr.mxu0 0.0
    %372 = vmatpush2.msra.mxu0 0.0
    %373 = vmatprep.subr.mxu0 0.0
    %374 = vmatpush2.msra.mxu0 0.0
    %375 = vmatprep.subr.mxu0 0.0
    %376 = vmatpush2.msra.mxu0 0.0
    %377 = vmatprep.subr.mxu0 0.0
    %378 = vmatpush2.msra.mxu0 0.0
    %379 = vmatprep.subr.mxu0 0.0
    %380 = vmatpush2.msra.mxu0 0.0
    %381 = vmatprep.subr.mxu0 0.0
    %382 = vmatpush2.msra.mxu0 0.0
    %383 = vmatprep.subr.mxu0 0.0
    %384 = vmatpush2.msra.mxu0 0.0
    %385 = vmatprep.subr.mxu0 0.0
    %386 = vmatpush2.msra.mxu0 0.0
    %387 = vmatprep.subr.mxu0 0.0
    %388 = vmatpush2.msra.mxu0 0.0
    %389 = vmatprep.subr.mxu0 0.0
    %390 = vmatpush2.msra.mxu0 0.0
    %391 = vmatprep.subr.mxu0 0.0
    %392 = vmatpush2.msra.mxu0 0.0
    %393 = vmatprep.subr.mxu0 0.0
    %394 = vmatpush2.msra.mxu0 0.0
    %395 = vmatprep.subr.mxu0 0.0
    %396 = vmatpush2.msra.mxu0 0.0
    %397 = vmatprep.subr.mxu0 0.0
    %398 = vmatpush2.msra.mxu0 0.0
    %399 = vmatprep.subr.mxu0 0.0
    %400 = vmatpush2.msra.mxu0 0.0
    %401 = vmatprep.mubr.f32.mxu0 0.0
    %402 = vmatmul.mubr.f32.gmra.mxu0 %v332
    %v403 = vpop.f32.mrf.mxu0
    %v404 = vadd.f32 0.0, %v403
    %v405 = vpop.f32.mrf.mxu0
    %406 = vmatprep.mubr.f32.mxu0 0.0
    %407 = vmatmul.mubr.f32.gmra.mxu0 %v335
    %v408 = vpop.f32.mrf.mxu0
    %v409 = vadd.f32 0.0, %v408
    %v410 = vpop.f32.mrf.mxu0
    %411 = vdwg.mxu0
    %412 = vmatprep.subr.mxu0 0.0
    %413 = vmatpush1.msra.mxu0 0.0
    %414 = vmatprep.subr.mxu0 0.0
    %415 = vmatpush1.msra.mxu0 0.0
    %416 = vmatprep.subr.mxu0 0.0
    %417 = vmatpush1.msra.mxu0 0.0
    %418 = vmatprep.subr.mxu0 0.0
    %419 = vmatpush1.msra.mxu0 0.0
    %420 = vmatprep.subr.mxu0 0.0
    %421 = vmatpush1.msra.mxu0 0.0
    %422 = vmatprep.subr.mxu0 0.0
    %423 = vmatpush1.msra.mxu0 0.0
    %424 = vmatprep.subr.mxu0 0.0
    %425 = vmatpush1.msra.mxu0 0.0
    %426 = vmatprep.subr.mxu0 0.0
    %427 = vmatpush1.msra.mxu0 0.0
    %428 = vmatprep.subr.mxu0 0.0
    %429 = vmatpush1.msra.mxu0 0.0
    %430 = vmatprep.subr.mxu0 0.0
    %431 = vmatpush1.msra.mxu0 0.0
    %432 = vmatprep.subr.mxu0 0.0
    %433 = vmatpush1.msra.mxu0 0.0
    %434 = vmatprep.subr.mxu0 0.0
    %435 = vmatpush1.msra.mxu0 0.0
    %436 = vmatprep.subr.mxu0 0.0
    %437 = vmatpush1.msra.mxu0 0.0
    %438 = vmatprep.subr.mxu0 0.0
    %439 = vmatpush1.msra.mxu0 0.0
    %440 = vmatprep.subr.mxu0 0.0
    %441 = vmatpush1.msra.mxu0 0.0
    %442 = vmatprep.subr.mxu0 0.0
    %443 = vmatpush1.msra.mxu0 %v309
    %444 = vmatprep.subr.mxu0 0.0
    %445 = vmatpush2.msra.mxu0 0.0
    %446 = vmatprep.subr.mxu0 0.0
    %447 = vmatpush2.msra.mxu0 0.0
    %448 = vmatprep.subr.mxu0 0.0
    %449 = vmatpush2.msra.mxu0 0.0
    %450 = vmatprep.subr.mxu0 0.0
    %451 = vmatpush2.msra.mxu0 0.0
    %452 = vmatprep.subr.mxu0 0.0
    %453 = vmatpush2.msra.mxu0 0.0
    %454 = vmatprep.subr.mxu0 0.0
    %455 = vmatpush2.msra.mxu0 0.0
    %456 = vmatprep.subr.mxu0 0.0
    %457 = vmatpush2.msra.mxu0 0.0
    %458 = vmatprep.subr.mxu0 0.0
    %459 = vmatpush2.msra.mxu0 0.0
    %460 = vmatprep.subr.mxu0 0.0
    %461 = vmatpush2.msra.mxu0 0.0
    %462 = vmatprep.subr.mxu0 0.0
    %463 = vmatpush2.msra.mxu0 0.0
    %464 = vmatprep.subr.mxu0 0.0
    %465 = vmatpush2.msra.mxu0 0.0
    %466 = vmatprep.subr.mxu0 0.0
    %467 = vmatpush2.msra.mxu0 0.0
    %468 = vmatprep.subr.mxu0 0.0
    %469 = vmatpush2.msra.mxu0 0.0
    %470 = vmatprep.subr.mxu0 0.0
    %471 = vmatpush2.msra.mxu0 0.0
    %472 = vmatprep.subr.mxu0 0.0
    %473 = vmatpush2.msra.mxu0 0.0
    %474 = vmatprep.subr.mxu0 0.0
    %475 = vmatpush2.msra.mxu0 0.0
    %476 = vmatprep.mubr.f32.mxu0 0.0
    %477 = vmatmul.mubr.f32.gmra.mxu0 %v332
    %v478 = vpop.f32.mrf.mxu0
    %v479 = vadd.f32 0.0, %v478
    %v480 = vpop.f32.mrf.mxu0
    %481 = vmatprep.mubr.f32.mxu0 0.0
    %482 = vmatmul.mubr.f32.gmra.mxu0 %v335
    %v483 = vpop.f32.mrf.mxu0
    %v484 = vadd.f32 0.0, %v483
    %v485 = vpop.f32.mrf.mxu0
    %486 = vdwg.mxu0
    %v487 = vld [vmem:[%s1] sm:$0xff]
    %v488 = vld [vmem:[%s1 + $0x8] sm:$0xff]
    %v489 = vmul.f32 %v487, %v479
    %v490 = vmul.f32 %v488, %v484
    %v491 = vadd.f32 %v489, %v404
    %v492 = vadd.f32 %v490, %v409
    %v493 = vld [vmem:[%s8] sm:$0xff]
    %v494 = vld [vmem:[%s9] sm:$0x1]
    %v496 = vlaneseq
    %v497 = vshrl.u32 %v496, 7
    %v498 = vsub.s32 0, %v497
    %v499 = vrot.slane %v494, %v498
    %v502 = vsel %vm312, %v491, 0
    %v505 = vsel %vm312, %v492, 0
    %507 = vmatprep.subr.mxu0 0.0
    %508 = vmatpush1.msra.mxu0 0.0
    %509 = vmatprep.subr.mxu0 0.0
    %510 = vmatpush1.msra.mxu0 0.0
    %511 = vmatprep.subr.mxu0 0.0
    %512 = vmatpush1.msra.mxu0 0.0
    %513 = vmatprep.subr.mxu0 0.0
    %514 = vmatpush1.msra.mxu0 0.0
    %515 = vmatprep.subr.mxu0 0.0
    %516 = vmatpush1.msra.mxu0 0.0
    %517 = vmatprep.subr.mxu0 0.0
    %518 = vmatpush1.msra.mxu0 0.0
    %519 = vmatprep.subr.mxu0 0.0
    %520 = vmatpush1.msra.mxu0 0.0
    %521 = vmatprep.subr.mxu0 0.0
    %522 = vmatpush1.msra.mxu0 0.0
    %523 = vmatprep.subr.mxu0 0.0
    %524 = vmatpush1.msra.mxu0 0.0
    %525 = vmatprep.subr.mxu0 0.0
    %526 = vmatpush1.msra.mxu0 0.0
    %527 = vmatprep.subr.mxu0 0.0
    %528 = vmatpush1.msra.mxu0 0.0
    %529 = vmatprep.subr.mxu0 0.0
    %530 = vmatpush1.msra.mxu0 0.0
    %531 = vmatprep.subr.mxu0 0.0
    %532 = vmatpush1.msra.mxu0 0.0
    %533 = vmatprep.subr.mxu0 0.0
    %534 = vmatpush1.msra.mxu0 0.0
    %535 = vmatprep.subr.mxu0 0.0
    %536 = vmatpush1.msra.mxu0 0.0
    %537 = vmatprep.subr.mxu0 0.0
    %538 = vmatpush1.msra.mxu0 %v493
    %539 = vmatprep.subr.mxu0 0.0
    %540 = vmatpush2.msra.mxu0 0.0
    %541 = vmatprep.subr.mxu0 0.0
    %542 = vmatpush2.msra.mxu0 0.0
    %543 = vmatprep.subr.mxu0 0.0
    %544 = vmatpush2.msra.mxu0 0.0
    %545 = vmatprep.subr.mxu0 0.0
    %546 = vmatpush2.msra.mxu0 0.0
    %547 = vmatprep.subr.mxu0 0.0
    %548 = vmatpush2.msra.mxu0 0.0
    %549 = vmatprep.subr.mxu0 0.0
    %550 = vmatpush2.msra.mxu0 0.0
    %551 = vmatprep.subr.mxu0 0.0
    %552 = vmatpush2.msra.mxu0 0.0
    %553 = vmatprep.subr.mxu0 0.0
    %554 = vmatpush2.msra.mxu0 0.0
    %555 = vmatprep.subr.mxu0 0.0
    %556 = vmatpush2.msra.mxu0 0.0
    %557 = vmatprep.subr.mxu0 0.0
    %558 = vmatpush2.msra.mxu0 0.0
    %559 = vmatprep.subr.mxu0 0.0
    %560 = vmatpush2.msra.mxu0 0.0
    %561 = vmatprep.subr.mxu0 0.0
    %562 = vmatpush2.msra.mxu0 0.0
    %563 = vmatprep.subr.mxu0 0.0
    %564 = vmatpush2.msra.mxu0 0.0
    %565 = vmatprep.subr.mxu0 0.0
    %566 = vmatpush2.msra.mxu0 0.0
    %567 = vmatprep.subr.mxu0 0.0
    %568 = vmatpush2.msra.mxu0 0.0
    %569 = vmatprep.subr.mxu0 0.0
    %570 = vmatpush2.msra.mxu0 0.0
    %571 = vmatprep.mubr.f32.mxu0 0.0
    %572 = vmatmul.mubr.f32.gmra.mxu0 %v502
    %v573 = vpop.f32.mrf.mxu0
    %v574 = vadd.f32 %v499, %v573
    %v575 = vpop.f32.mrf.mxu0
    %576 = vmatprep.mubr.f32.mxu0 0.0
    %577 = vmatmul.mubr.f32.gmra.mxu0 %v505
    %v578 = vpop.f32.mrf.mxu0
    %v579 = vadd.f32 %v499, %v578
    %v580 = vpop.f32.mrf.mxu0
    %581 = vdwg.mxu0
    %v582 = vsub.f32 0.0, %v574
    %v583 = vsub.f32 0.0, %v579
    %v584 = vmul.f32 %v582, 1.442695
    %v585 = vpow.pop %v584
    %v586 = vmul.f32 %v583, 1.442695
    %v587 = vpow.pop %v586
    %v588 = vadd.f32 %v585, 1.0
    %v589 = vadd.f32 %v587, 1.0
    %v590 = vrcp.pop %v588
    %v591 = vmul.f32 1.0, %v590
    %v592 = vrcp.pop %v589
    %v593 = vmul.f32 1.0, %v592
    %v594 = vld [vmem:[%s10] sm:$0xff]
    %v595 = vld [vmem:[%s10 + $0x8] sm:$0xff]
    %v596 = vld [vmem:[%s10 + $0x10] sm:$0xff]
    %v597 = vld [vmem:[%s10 + $0x18] sm:$0xff]
    %v598 = vld [vmem:[%s10 + $0x20] sm:$0xff]
    %v599 = vld [vmem:[%s10 + $0x28] sm:$0xff]
    %v600 = vld [vmem:[%s10 + $0x30] sm:$0xff]
    %v601 = vld [vmem:[%s10 + $0x38] sm:$0xff]
    %v602 = vld [vmem:[%s11] sm:$0x1]
    %v604 = vlaneseq
    %v605 = vshrl.u32 %v604, 7
    %v606 = vsub.s32 0, %v605
    %v607 = vrot.slane %v602, %v606
    %v610 = vsel %vm153, %v591, 0
    %v613 = vsel %vm153, %v593, 0
    %615 = vmatprep.subr.mxu0 0.0
    %616 = vmatpush1.msra.mxu0 0.0
    %617 = vmatprep.subr.mxu0 0.0
    %618 = vmatpush1.msra.mxu0 0.0
    %619 = vmatprep.subr.mxu0 0.0
    %620 = vmatpush1.msra.mxu0 0.0
    %621 = vmatprep.subr.mxu0 0.0
    %622 = vmatpush1.msra.mxu0 0.0
    %623 = vmatprep.subr.mxu0 0.0
    %624 = vmatpush1.msra.mxu0 0.0
    %625 = vmatprep.subr.mxu0 0.0
    %626 = vmatpush1.msra.mxu0 0.0
    %627 = vmatprep.subr.mxu0 0.0
    %628 = vmatpush1.msra.mxu0 0.0
    %629 = vmatprep.subr.mxu0 0.0
    %630 = vmatpush1.msra.mxu0 0.0
    %631 = vmatprep.subr.mxu0 0.0
    %632 = vmatpush1.msra.mxu0 %v601
    %633 = vmatprep.subr.mxu0 0.0
    %634 = vmatpush1.msra.mxu0 %v600
    %635 = vmatprep.subr.mxu0 0.0
    %636 = vmatpush1.msra.mxu0 %v599
    %637 = vmatprep.subr.mxu0 0.0
    %638 = vmatpush1.msra.mxu0 %v598
    %639 = vmatprep.subr.mxu0 0.0
    %640 = vmatpush1.msra.mxu0 %v597
    %641 = vmatprep.subr.mxu0 0.0
    %642 = vmatpush1.msra.mxu0 %v596
    %643 = vmatprep.subr.mxu0 0.0
    %644 = vmatpush1.msra.mxu0 %v595
    %645 = vmatprep.subr.mxu0 0.0
    %646 = vmatpush1.msra.mxu0 %v594
    %647 = vmatprep.subr.mxu0 0.0
    %648 = vmatpush2.msra.mxu0 0.0
    %649 = vmatprep.subr.mxu0 0.0
    %650 = vmatpush2.msra.mxu0 0.0
    %651 = vmatprep.subr.mxu0 0.0
    %652 = vmatpush2.msra.mxu0 0.0
    %653 = vmatprep.subr.mxu0 0.0
    %654 = vmatpush2.msra.mxu0 0.0
    %655 = vmatprep.subr.mxu0 0.0
    %656 = vmatpush2.msra.mxu0 0.0
    %657 = vmatprep.subr.mxu0 0.0
    %658 = vmatpush2.msra.mxu0 0.0
    %659 = vmatprep.subr.mxu0 0.0
    %660 = vmatpush2.msra.mxu0 0.0
    %661 = vmatprep.subr.mxu0 0.0
    %662 = vmatpush2.msra.mxu0 0.0
    %663 = vmatprep.subr.mxu0 0.0
    %664 = vmatpush2.msra.mxu0 0.0
    %665 = vmatprep.subr.mxu0 0.0
    %666 = vmatpush2.msra.mxu0 0.0
    %667 = vmatprep.subr.mxu0 0.0
    %668 = vmatpush2.msra.mxu0 0.0
    %669 = vmatprep.subr.mxu0 0.0
    %670 = vmatpush2.msra.mxu0 0.0
    %671 = vmatprep.subr.mxu0 0.0
    %672 = vmatpush2.msra.mxu0 0.0
    %673 = vmatprep.subr.mxu0 0.0
    %674 = vmatpush2.msra.mxu0 0.0
    %675 = vmatprep.subr.mxu0 0.0
    %676 = vmatpush2.msra.mxu0 0.0
    %677 = vmatprep.subr.mxu0 0.0
    %678 = vmatpush2.msra.mxu0 0.0
    %679 = vmatprep.mubr.f32.mxu0 0.0
    %680 = vmatmul.mubr.f32.gmra.mxu0 %v610
    %v681 = vpop.f32.mrf.mxu0
    %v682 = vadd.f32 %v607, %v681
    %v683 = vpop.f32.mrf.mxu0
    %684 = vmatprep.mubr.f32.mxu0 0.0
    %685 = vmatmul.mubr.f32.gmra.mxu0 %v613
    %v686 = vpop.f32.mrf.mxu0
    %v687 = vadd.f32 %v607, %v686
    %v688 = vpop.f32.mrf.mxu0
    %689 = vdwg.mxu0
    %v690 = vsub.f32 0.0, %v682
    %v691 = vsub.f32 0.0, %v687
    %v692 = vmul.f32 %v690, 1.442695
    %v693 = vpow.pop %v692
    %v694 = vmul.f32 %v691, 1.442695
    %v695 = vpow.pop %v694
    %v696 = vadd.f32 %v693, 1.0
    %v697 = vadd.f32 %v695, 1.0
    %v698 = vrcp.pop %v696
    %v699 = vmul.f32 1.0, %v698
    %v700 = vrcp.pop %v697
    %v701 = vmul.f32 1.0, %v700
    %702 = vst.msk [vmem:[#allocation2] sm:$0xff] %vm58, %v699
    %703 = vst.msk [vmem:[#allocation2 + $0x8] sm:$0xff] %vm58, %v701
    // Predicated region
    $region50: #{tpu_custom_call.1} parent=1 // pred_check
      _
    $region51: #{tpu_custom_call.1} parent=1 // pred_check_branch
      %705 = sbr.rel (0) target = $region53
    $region52: #{tpu_custom_call.1} parent=1 // pred_region
      %s707 = ssub.s32 256, 256
      %708 = vsyncadd [#allocation3], %s707
      %s709 = sshll.u32 [#allocation2], 4
      %s710 = int_to_ptr.vmem [resolvable:$true] %s709
      %715 = dma.vmem_to_hbm [thread:$0]  %s710, 256, %s12, [#allocation3], 128, 128, 8
    $region53: #{tpu_custom_call.1} parent=1 // pred_fallthru
      _
    // Predicated region
    $region54: #{tpu_custom_call.1} parent=1 // pred_check
      _
    $region55: #{tpu_custom_call.1} parent=1 // pred_check_branch
      %717 = sbr.rel (0) target = $region57
    $region56: #{tpu_custom_call.1} parent=1 // pred_region
      %s719 = ssub.s32 128, 128
      %720 = vsyncadd [#allocation5], %s719
      %s722 = sshll.u32 [#allocation4], 4
      %s723 = int_to_ptr.vmem [resolvable:$true] %s722
      %725 = dma.vmem_to_hbm [thread:$0]  %s723, 128, %s13, [#allocation5]
    $region57: #{tpu_custom_call.1} parent=1 // pred_fallthru
      _
    // Predicated region
    $region58: #{tpu_custom_call.1} parent=1 // pred_check
      _
    $region59: #{tpu_custom_call.1} parent=1 // pred_check_branch
      %727 = sbr.rel (0) target = $region61
    $region60: #{tpu_custom_call.1} parent=1 // pred_region
      %s729 = ssub.s32 128, 128
      %730 = vsyncadd [#allocation5], %s729
      %s732 = sshll.u32 [#allocation6], 4
      %s733 = int_to_ptr.vmem [resolvable:$true] %s732
      %735 = dma.vmem_to_hbm [thread:$0]  %s733, 128, %s14, [#allocation5]
    $region61: #{tpu_custom_call.1} parent=1 // pred_fallthru
      _
    // Predicated region
    $region62: #{tpu_custom_call.1} parent=1 // pred_check
      _
    $region63: #{tpu_custom_call.1} parent=1 // pred_check_branch
      %737 = sbr.rel (0) target = $region65
    $region64: #{tpu_custom_call.1} parent=1 // pred_region
      %738 = dma.done [#allocation3], 256
    $region65: #{tpu_custom_call.1} parent=1 // pred_fallthru
      _
    // Predicated region
    $region66: #{tpu_custom_call.1} parent=1 // pred_check
      _
    $region67: #{tpu_custom_call.1} parent=1 // pred_check_branch
      %740 = sbr.rel (0) target = $region69
    $region68: #{tpu_custom_call.1} parent=1 // pred_region
      %741 = dma.done [#allocation5], 128
    $region69: #{tpu_custom_call.1} parent=1 // pred_fallthru
      _
    // Predicated region
    $region70: #{tpu_custom_call.1} parent=1 // pred_check
      _
    $region71: #{tpu_custom_call.1} parent=1 // pred_check_branch
      %743 = sbr.rel (0) target = $region73
    $region72: #{tpu_custom_call.1} parent=1 // pred_region
      %744 = dma.done [#allocation5], 128
    $region73: #{tpu_custom_call.1} parent=1 // pred_fallthru
      _
    %745 = vsyncpa [#allocation3], 1
    %746 = vsyncpa [#allocation5], 1

</llo_original>
